<compile_context>
chip_gen: v6e
topology: v6e:2x2x1
jax: 0.10.0
libtpu: 0.0.40
codegen_flags: <defaults>
</compile_context>

<pallas_src>
import functools

import jax
import jax.numpy as jnp
from jax.experimental import pallas as pl
from jax.experimental.pallas import tpu as pltpu


_LANE = 512           # lane-dense last dim (multiple of 128)
_MAX_TILE_ROWS = 512  # up to (512, 512) f32 blocks = 1 MiB / input / buffer
_NCHUNKS = 2          # leading 'parallel' axis for v7x's 2 TensorCores


def _coord_loss_kernel(pred_ref, target_ref, valid_ref, out_ref, acc_ref, *,
                       loss_type, total_rows, steps_per_chunk, tile_rows):
    c = pl.program_id(0)   # parallel chunk
    k = pl.program_id(1)   # sequential step inside the chunk

    @pl.when(k == 0)
    def _():
        acc_ref[...] = jnp.zeros_like(acc_ref)

    # Row mask computed from the *unclamped* tile index: zeroes the OOB rows of
    # the ragged last tile and any clamped/duplicated tile of a short chunk.
    row_start = (c * steps_per_chunk + k) * tile_rows
    rows = jax.lax.broadcasted_iota(jnp.int32, acc_ref.shape, 0) + row_start
    in_bounds = rows < total_rows

    # One multiply by the mask: |v*(p-t)| == |v*p - v*t|; (v*(p-t))^2 likewise.
    d = (pred_ref[...] - target_ref[...]) * valid_ref[...]
    contrib = jnp.abs(d) if loss_type == "l1" else d * d
    acc_ref[...] += jnp.where(in_bounds, contrib, 0.0)   # pure-VPU hot loop

    @pl.when(k == pl.num_programs(1) - 1)
    def _():
        # Single per-chunk reduction: (TR, L) -> (TR//8, 8, L) -> (8, L).
        lane = acc_ref.shape[-1]
        partial = jnp.sum(acc_ref[...].reshape(tile_rows // 8, 8, lane), axis=0)
        out_ref[...] = partial[None, :, :]


def _masked_loss_sum(pred2d, target2d, valid2d, loss_type):
    """pred2d/target2d/valid2d: (R, _LANE) f32 with R a multiple of 8.

    Returns sum over all elements of |(p-t)*v| (l1) or ((p-t)*v)^2 (l2)."""
    R, L = pred2d.shape
    tile_rows = min(_MAX_TILE_ROWS, R)
    n_row_blocks = pl.cdiv(R, tile_rows)
    n_chunks = min(_NCHUNKS, n_row_blocks)
    steps = pl.cdiv(n_row_blocks, n_chunks)

    kernel = functools.partial(
        _coord_loss_kernel,
        loss_type=loss_type,
        total_rows=R,
        steps_per_chunk=steps,
        tile_rows=tile_rows,
    )

    def in_map(c, k):
        # Clamp so a short chunk never issues a fully out-of-bounds DMA; the
        # in-kernel row mask zeroes the duplicated tile's contribution.
        blk = jnp.minimum(c * steps + k, n_row_blocks - 1)
        return (blk, 0)

    out = pl.pallas_call(
        kernel,
        out_shape=jax.ShapeDtypeStruct((n_chunks, 8, L), jnp.float32),
        grid_spec=pltpu.PrefetchScalarGridSpec(
            num_scalar_prefetch=0,
            grid=(n_chunks, steps),
            in_specs=[
                pl.BlockSpec((tile_rows, L), in_map),
                pl.BlockSpec((tile_rows, L), in_map),
                pl.BlockSpec((tile_rows, L), in_map),
            ],
            out_specs=pl.BlockSpec((1, 8, L), lambda c, k: (c, 0, 0)),
            scratch_shapes=[pltpu.VMEM((tile_rows, L), jnp.float32)],
        ),
        compiler_params=pltpu.CompilerParams(
            dimension_semantics=("parallel", "arbitrary"),
            vmem_limit_bytes=32 * 1024 * 1024,
        ),
    )(pred2d, target2d, valid2d)
    return jnp.sum(out)


def coord_loss(pred, target, valid=None, loss_type="l1"):
    """JAX/Pallas equivalent of CoordLoss.forward.

    pred:   (..., C)
    target: (..., C) or (..., C+1) where the last channel is the validity flag
    valid:  optional (...,) mask
    """
    pred = jnp.asarray(pred, jnp.float32)
    target = jnp.asarray(target, jnp.float32)

    if valid is None:
        if pred.shape[-1] != target.shape[-1]:
            target, valid = target[..., :-1], target[..., -1]
        else:
            # Plain (unmasked) mean loss == mask of ones.
            valid = jnp.ones(pred.shape[:-1], jnp.float32)
    else:
        valid = jnp.asarray(valid, jnp.float32)

    numel = pred.size  # L1Loss/MSELoss 'mean' divides by the total element count

    # Lane-dense repack: flatten to 1-D; the mask is expanded across the coord
    # dim so it lines up elementwise (one fused materialization pass).
    pred_flat = pred.reshape(-1)
    target_flat = target.reshape(-1)
    valid_flat = (
        jnp.broadcast_to(valid[..., None], pred.shape).astype(jnp.float32).reshape(-1)
    )

    n = pred_flat.size
    align = 8 * _LANE
    n_pad = (-n) % align
    if n_pad:
        # Only needed to make the (free) 2-D reshape legal; padded region is all
        # zeros so it contributes nothing.  Skipped entirely when n is aligned.
        pred_flat = jnp.pad(pred_flat, (0, n_pad))
        target_flat = jnp.pad(target_flat, (0, n_pad))
        valid_flat = jnp.pad(valid_flat, (0, n_pad))
    rows = (n + n_pad) // _LANE  # multiple of 8, >= 8

    total = _masked_loss_sum(
        pred_flat.reshape(rows, _LANE),
        target_flat.reshape(rows, _LANE),
        valid_flat.reshape(rows, _LANE),
        loss_type,
    )
    return total / jnp.float32(numel)


def _reference(pred, target, valid=None, loss_type="l1"):
    pred = jnp.asarray(pred, jnp.float32)
    target = jnp.asarray(target, jnp.float32)
    if valid is None:
        if pred.shape[-1] != target.shape[-1]:
            target, valid = target[..., :-1], target[..., -1]
        else:
            valid = jnp.ones(pred.shape[:-1], jnp.float32)
    else:
        valid = jnp.asarray(valid, jnp.float32)
    p = pred * valid[..., None]
    t = target * valid[..., None]
    d = p - t
    if loss_type == "l1":
        return jnp.mean(jnp.abs(d))
    return jnp.mean(d * d)


if __name__ == "__main__":
    key = jax.random.PRNGKey(0)
    k1, k2, k3, k4, k5, k6 = jax.random.split(key, 6)

    # --- small case: target carries the validity flag in its last channel ---
    B, J, C = 2, 8, 3
    pred = jax.random.normal(k1, (B, J, C), dtype=jnp.float32)
    coords = jax.random.normal(k2, (B, J, C), dtype=jnp.float32)
    valid_flag = (jax.random.uniform(k3, (B, J, 1)) > 0.3).astype(jnp.float32)
    target = jnp.concatenate([coords, valid_flag], axis=-1)  # (B, J, C+1)

    out_l1 = jax.block_until_ready(coord_loss(pred, target, loss_type="l1"))
    out_l2 = jax.block_until_ready(coord_loss(pred, target, loss_type="l2"))
    ref_l1 = _reference(pred, target, loss_type="l1")
    ref_l2 = _reference(pred, target, loss_type="l2")
    assert jnp.allclose(out_l1, ref_l1, rtol=1e-5, atol=1e-6), (out_l1, ref_l1)
    assert jnp.allclose(out_l2, ref_l2, rtol=1e-5, atol=1e-6), (out_l2, ref_l2)

    # --- small case: no mask at all (equal shapes -> plain mean loss) ---
    out_nm = jax.block_until_ready(coord_loss(pred, coords, loss_type="l1"))
    ref_nm = _reference(pred, coords, loss_type="l1")
    assert jnp.allclose(out_nm, ref_nm, rtol=1e-5, atol=1e-6), (out_nm, ref_nm)

    # --- larger case: explicit valid mask, exercises multi-block + 2 chunks ---
    B2, J2 = 2, 50000
    pred_b = jax.random.normal(k4, (B2, J2, C), dtype=jnp.float32)
    target_b = jax.random.normal(k5, (B2, J2, C), dtype=jnp.float32)
    valid_b = (jax.random.uniform(k6, (B2, J2)) > 0.5).astype(jnp.float32)

    out_b = jax.block_until_ready(coord_loss(pred_b, target_b, valid_b, loss_type="l2"))
    ref_b = _reference(pred_b, target_b, valid_b, loss_type="l2")
    assert jnp.allclose(out_b, ref_b, rtol=5e-4, atol=1e-6), (out_b, ref_b)

    print("KERNEL_OK")
</pallas_src>

<mosaic_0001>
module attributes {stable_mosaic.version = 11 : i64} {
  func.func @_coord_loss_kernel(%arg0: i32, %arg1: i32, %arg2: memref<8x512xf32, #tpu.memory_space<vmem>>, %arg3: memref<8x512xf32, #tpu.memory_space<vmem>>, %arg4: memref<8x512xf32, #tpu.memory_space<vmem>>, %arg5: memref<1x8x512xf32, #tpu.memory_space<vmem>>, %arg6: memref<8x512xf32, #tpu.memory_space<vmem>>) attributes {dimension_semantics = [#tpu.dimension_semantics<parallel>, #tpu.dimension_semantics<arbitrary>], iteration_bounds = array<i64: 1, 1>, scalar_prefetch = 0 : i64, scratch_operands = 1 : i64, tpu.core_type = #tpu.core_type<tc>, window_params = [{transform_indices = @transform_0, window_bounds = array<i64: 8, 512>}, {transform_indices = @transform_1, window_bounds = array<i64: 8, 512>}, {transform_indices = @transform_2, window_bounds = array<i64: 8, 512>}, {transform_indices = @transform_3, window_bounds = array<i64: 1, 8, 512>}]} {
    %c0_i32 = arith.constant 0 : i32
    %0 = arith.cmpi eq, %arg1, %c0_i32 : i32
    %1 = arith.extui %0 : i1 to i32
    %c0_i32_0 = arith.constant 0 : i32
    %2 = arith.cmpi ne, %1, %c0_i32_0 : i32
    scf.if %2 {
      %cst_13 = arith.constant 0.000000e+00 : f32
      %25 = vector.broadcast %cst_13 : f32 to vector<8x512xf32>
      %c0_14 = arith.constant 0 : index
      %c0_15 = arith.constant 0 : index
      %26 = vector.load %arg6[%c0_14, %c0_15] : memref<8x512xf32, #tpu.memory_space<vmem>>, vector<8x512xf32>
      tpu.vector_store %arg6[%c0_14, %c0_15], %25 {strides = array<i32>} : memref<8x512xf32, #tpu.memory_space<vmem>>, vector<8x512xf32>,
    } else {
    }
    %c1_i32 = arith.constant 1 : i32
    %3 = arith.muli %arg0, %c1_i32 : i32
    %4 = arith.addi %3, %arg1 : i32
    %c8_i32 = arith.constant 8 : i32
    %5 = arith.muli %4, %c8_i32 : i32
    %6 = tpu.iota {dimensions = array<i32: 0>} : vector<8x512xi32>
    %7 = vector.broadcast %5 : i32 to vector<8x512xi32>
    %8 = arith.addi %6, %7 : vector<8x512xi32>
    %c8_i32_1 = arith.constant 8 : i32
    %9 = vector.broadcast %c8_i32_1 : i32 to vector<8x512xi32>
    %10 = arith.cmpi slt, %8, %9 : vector<8x512xi32>
    %c0 = arith.constant 0 : index
    %c0_2 = arith.constant 0 : index
    %11 = vector.load %arg2[%c0, %c0_2] : memref<8x512xf32, #tpu.memory_space<vmem>>, vector<8x512xf32>
    %c0_3 = arith.constant 0 : index
    %c0_4 = arith.constant 0 : index
    %12 = vector.load %arg3[%c0_3, %c0_4] : memref<8x512xf32, #tpu.memory_space<vmem>>, vector<8x512xf32>
    %13 = arith.subf %11, %12 : vector<8x512xf32>
    %c0_5 = arith.constant 0 : index
    %c0_6 = arith.constant 0 : index
    %14 = vector.load %arg4[%c0_5, %c0_6] : memref<8x512xf32, #tpu.memory_space<vmem>>, vector<8x512xf32>
    %15 = arith.mulf %13, %14 : vector<8x512xf32>
    %16 = math.absf %15 : vector<8x512xf32>
    %c0_7 = arith.constant 0 : index
    %c0_8 = arith.constant 0 : index
    %17 = vector.load %arg6[%c0_7, %c0_8] : memref<8x512xf32, #tpu.memory_space<vmem>>, vector<8x512xf32>
    %cst = arith.constant 0.000000e+00 : f32
    %18 = vector.broadcast %cst : f32 to vector<8x512xf32>
    %19 = arith.select %10, %16, %18 : vector<8x512xi1>, vector<8x512xf32>
    %20 = arith.addf %17, %19 : vector<8x512xf32>
    %c0_9 = arith.constant 0 : index
    %c0_10 = arith.constant 0 : index
    %21 = vector.load %arg6[%c0_9, %c0_10] : memref<8x512xf32, #tpu.memory_space<vmem>>, vector<8x512xf32>
    tpu.vector_store %arg6[%c0_9, %c0_10], %20 {strides = array<i32>} : memref<8x512xf32, #tpu.memory_space<vmem>>, vector<8x512xf32>,
    %c0_i32_11 = arith.constant 0 : i32
    %22 = arith.cmpi eq, %arg1, %c0_i32_11 : i32
    %23 = arith.extui %22 : i1 to i32
    %c0_i32_12 = arith.constant 0 : i32
    %24 = arith.cmpi ne, %23, %c0_i32_12 : i32
    scf.if %24 {
      %c0_13 = arith.constant 0 : index
      %c0_14 = arith.constant 0 : index
      %25 = vector.load %arg6[%c0_13, %c0_14] : memref<8x512xf32, #tpu.memory_space<vmem>>, vector<8x512xf32>
      %26 = vector.shape_cast %25 : vector<8x512xf32> to vector<1x8x512xf32>
      %cst_15 = arith.constant dense<0.000000e+00> : vector<8x512xf32>
      %27 = vector.multi_reduction <add>, %26, %cst_15 [0] : vector<1x8x512xf32> to vector<8x512xf32>
      %28 = vector.shape_cast %27 : vector<8x512xf32> to vector<1x8x512xf32>
      %c0_16 = arith.constant 0 : index
      %c0_17 = arith.constant 0 : index
      %c0_18 = arith.constant 0 : index
      %29 = vector.load %arg5[%c0_16, %c0_17, %c0_18] : memref<1x8x512xf32, #tpu.memory_space<vmem>>, vector<1x8x512xf32>
      tpu.vector_store %arg5[%c0_16, %c0_17, %c0_18], %28 {strides = array<i32>} : memref<1x8x512xf32, #tpu.memory_space<vmem>>, vector<1x8x512xf32>,
    } else {
    }
    return
  }
  func.func @transform_0(%arg0: i32, %arg1: i32) -> (i32, i32) {
    %c1_i32 = arith.constant 1 : i32
    %0 = arith.muli %arg0, %c1_i32 : i32
    %1 = arith.addi %0, %arg1 : i32
    %c0_i32 = arith.constant 0 : i32
    %2 = arith.minsi %1, %c0_i32 : i32
    %c0_i32_0 = arith.constant 0 : i32
    %c0_i32_1 = arith.constant 0 : i32
    return %2, %c0_i32_0 : i32, i32
  }
  func.func @transform_1(%arg0: i32, %arg1: i32) -> (i32, i32) {
    %c1_i32 = arith.constant 1 : i32
    %0 = arith.muli %arg0, %c1_i32 : i32
    %1 = arith.addi %0, %arg1 : i32
    %c0_i32 = arith.constant 0 : i32
    %2 = arith.minsi %1, %c0_i32 : i32
    %c0_i32_0 = arith.constant 0 : i32
    %c0_i32_1 = arith.constant 0 : i32
    return %2, %c0_i32_0 : i32, i32
  }
  func.func @transform_2(%arg0: i32, %arg1: i32) -> (i32, i32) {
    %c1_i32 = arith.constant 1 : i32
    %0 = arith.muli %arg0, %c1_i32 : i32
    %1 = arith.addi %0, %arg1 : i32
    %c0_i32 = arith.constant 0 : i32
    %2 = arith.minsi %1, %c0_i32 : i32
    %c0_i32_0 = arith.constant 0 : i32
    %c0_i32_1 = arith.constant 0 : i32
    return %2, %c0_i32_0 : i32, i32
  }
  func.func @transform_3(%arg0: i32, %arg1: i32) -> (i32, i32, i32) {
    %c0_i32 = arith.constant 0 : i32
    %c0_i32_0 = arith.constant 0 : i32
    %c0_i32_1 = arith.constant 0 : i32
    return %arg0, %c0_i32, %c0_i32_0 : i32, i32, i32
  }
}

</mosaic_0001>

<llo_original>
// kernel: tpu_custom_call.1
$region0: #{tpu_custom_call.1}
  #allocation0 [shape = 'u32[]', space=smem, size = 0x4, offset = 0x4, fixed_abs, tag = 'smem constant byte address 0x4 - core index']
  #allocation1 [shape = 'u32[144,128]{1,0:T(1,128)}', space=vmem, size = 0x12000, scoped, tag = 'internal scratch']
  #allocation2 [shape = 'f32[8,512]{1,0:T(8,128)}', space=vmem, size = 0x4000, scoped, tag = 'scratch operand']
  %s0 = inlined_call_operand.hbm [shape: f32[8,512], index: 0, kind: input, shape index: {}]
  %s1 = inlined_call_operand.hbm [shape: f32[8,512], index: 1, kind: input, shape index: {}]
  %s2 = inlined_call_operand.hbm [shape: f32[8,512], index: 2, kind: input, shape index: {}]
  %s3 = inlined_call_operand.hbm [shape: f32[1,8,512], index: 3, kind: output, shape index: {}]
  %s4 = sld [smem:[#allocation0]]
  $region42: #{tpu_custom_call.1} parent=0
    _
  %s6 = ssub.s32 1, %s4
  %s7 = scalar_select 0, %s6, %s4
  $region1: #{tpu_custom_call.1} parent=0
    #allocation3 [shape = 'u8[16384]{0}', space=vmem, size = 0x4000, scoped, tag = 'input window, operand 0, single buffered']
    #allocation4 [shape = 's32[1]{0}', space=sflag, size = 0x4, scoped, tag = 'scoped memory for tpu_custom_call.1']
    #allocation5 [shape = 's32[1]{0}', space=sflag, size = 0x4, scoped, tag = 'scoped memory for tpu_custom_call.1']
    #allocation6 [shape = 'u8[16384]{0}', space=vmem, size = 0x4000, scoped, tag = 'input window, operand 1, single buffered']
    #allocation7 [shape = 's32[1]{0}', space=sflag, size = 0x4, scoped, tag = 'scoped memory for tpu_custom_call.1']
    #allocation8 [shape = 'u8[16384]{0}', space=vmem, size = 0x4000, scoped, tag = 'input window, operand 2, single buffered']
    #allocation9 [shape = 'u8[16384]{0}', space=vmem, size = 0x4000, scoped, tag = 'output window, operand 0, single buffered']
    %8 = vsyncpa [#allocation4], 0
    %9 = vsyncpa [#allocation7], 0
    %10 = vsyncpa [#allocation5], 0
    // Predicated region
    $region2: #{tpu_custom_call.1} parent=1 // pred_check
      _
    $region3: #{tpu_custom_call.1} parent=1 // pred_check_branch
      %12 = sbr.rel (0) target = $region5
    $region4: #{tpu_custom_call.1} parent=1 // pred_region
      %s13 = sadd.s32 0, 0
      %p14 = scmp.lt.s32.totalorder %s13, 0
      %s15 = scalar_select %p14, %s13, 0
      %s17 = ssub.s32 512, 512
      %18 = vsyncadd [#allocation4], %s17
      %s19 = smul.addr %s15, 4
      %s20 = smul.addr %s19, 128
      %s21 = scalar_lea.hbm %s0, %s20
      %s23 = sshll.u32 [#allocation3], 4
      %s24 = int_to_ptr.vmem [resolvable:$true] %s23
      %26 = dma.hbm_to_vmem [thread:$0]  %s21, 512, %s24, [#allocation4]
    $region5: #{tpu_custom_call.1} parent=1 // pred_fallthru
      _
    // Predicated region
    $region6: #{tpu_custom_call.1} parent=1 // pred_check
      _
    $region7: #{tpu_custom_call.1} parent=1 // pred_check_branch
      %28 = sbr.rel (0) target = $region9
    $region8: #{tpu_custom_call.1} parent=1 // pred_region
      %s29 = sadd.s32 0, 0
      %p30 = scmp.lt.s32.totalorder %s29, 0
      %s31 = scalar_select %p30, %s29, 0
      %s33 = ssub.s32 512, 512
      %34 = vsyncadd [#allocation7], %s33
      %s35 = smul.addr %s31, 4
      %s36 = smul.addr %s35, 128
      %s37 = scalar_lea.hbm %s1, %s36
      %s39 = sshll.u32 [#allocation6], 4
      %s40 = int_to_ptr.vmem [resolvable:$true] %s39
      %42 = dma.hbm_to_vmem [thread:$0]  %s37, 512, %s40, [#allocation7]
    $region9: #{tpu_custom_call.1} parent=1 // pred_fallthru
      _
    // Predicated region
    $region10: #{tpu_custom_call.1} parent=1 // pred_check
      _
    $region11: #{tpu_custom_call.1} parent=1 // pred_check_branch
      %44 = sbr.rel (0) target = $region13
    $region12: #{tpu_custom_call.1} parent=1 // pred_region
      %s45 = sadd.s32 0, 0
      %p46 = scmp.lt.s32.totalorder %s45, 0
      %s47 = scalar_select %p46, %s45, 0
      %s49 = ssub.s32 512, 512
      %50 = vsyncadd [#allocation7], %s49
      %s51 = smul.addr %s47, 4
      %s52 = smul.addr %s51, 128
      %s53 = scalar_lea.hbm %s2, %s52
      %s55 = sshll.u32 [#allocation8], 4
      %s56 = int_to_ptr.vmem [resolvable:$true] %s55
      %58 = dma.hbm_to_vmem [thread:$0]  %s53, 512, %s56, [#allocation7]
    $region13: #{tpu_custom_call.1} parent=1 // pred_fallthru
      _
    // Predicated region
    $region14: #{tpu_custom_call.1} parent=1 // pred_check
      _
    $region15: #{tpu_custom_call.1} parent=1 // pred_check_branch
      %60 = sbr.rel (0) target = $region17
    $region16: #{tpu_custom_call.1} parent=1 // pred_region
      %61 = dma.done [#allocation4], 512
    $region17: #{tpu_custom_call.1} parent=1 // pred_fallthru
      _
    // Predicated region
    $region18: #{tpu_custom_call.1} parent=1 // pred_check
      _
    $region19: #{tpu_custom_call.1} parent=1 // pred_check_branch
      %63 = sbr.rel (0) target = $region21
    $region20: #{tpu_custom_call.1} parent=1 // pred_region
      %64 = dma.done [#allocation7], 512
    $region21: #{tpu_custom_call.1} parent=1 // pred_fallthru
      _
    // Predicated region
    $region22: #{tpu_custom_call.1} parent=1 // pred_check
      _
    $region23: #{tpu_custom_call.1} parent=1 // pred_check_branch
      %66 = sbr.rel (0) target = $region25
    $region24: #{tpu_custom_call.1} parent=1 // pred_region
      %67 = dma.done [#allocation7], 512
    $region25: #{tpu_custom_call.1} parent=1 // pred_fallthru
      _
    %s68 = sadd.s32 0, 0
    %p69 = scmp.lt.s32.totalorder %s68, 0
    %s70 = scalar_select %p69, %s68, 0
    %s71 = sadd.s32 0, 0
    %p72 = scmp.lt.s32.totalorder %s71, 0
    %s73 = scalar_select %p72, %s71, 0
    %s74 = sadd.s32 0, 0
    %p75 = scmp.lt.s32.totalorder %s74, 0
    %s76 = scalar_select %p75, %s74, 0
    %p77 = scmp.eq.s32.totalorder 0, 0
    // Predicated region
    $region26: #{tpu_custom_call.1} parent=1 // pred_check
      %p78 = pneg %p77
    $region27: #{tpu_custom_call.1} parent=1 // pred_check_branch
      %80 = sbr.rel (%p78) target = $region29
    $region28: #{tpu_custom_call.1} parent=1 // pred_region
      %81 = vst [vmem:[#allocation2] sm:$0xff] 0.0
      %82 = vst [vmem:[#allocation2 + $0x8] sm:$0xff] 0.0
      %83 = vst [vmem:[#allocation2 + $0x10] sm:$0xff] 0.0
      %84 = vst [vmem:[#allocation2 + $0x18] sm:$0xff] 0.0
    $region29: #{tpu_custom_call.1} parent=1 // pred_fallthru
      _
    %s85 = sadd.s32 0, 0
    %s86 = smul.u32 %s85, 8
    %v87 = vlaneseq
    %v88 = vshrl.u32 %v87, 7
    %v89 = vstv %s86
    %v90 = vadd.s32 %v88, %v89
    %vm91 = vcmp.lt.s32.totalorder %v90, 8
    %v92 = vld [vmem:[#allocation3] sm:$0xff]
    %v93 = vld [vmem:[#allocation3 + $0x8] sm:$0xff]
    %v94 = vld [vmem:[#allocation3 + $0x10] sm:$0xff]
    %v95 = vld [vmem:[#allocation3 + $0x18] sm:$0xff]
    %v96 = vld [vmem:[#allocation6] sm:$0xff]
    %v97 = vld [vmem:[#allocation6 + $0x8] sm:$0xff]
    %v98 = vld [vmem:[#allocation6 + $0x10] sm:$0xff]
    %v99 = vld [vmem:[#allocation6 + $0x18] sm:$0xff]
    %v100 = vsub.f32 %v92, %v96
    %v101 = vsub.f32 %v93, %v97
    %v102 = vsub.f32 %v94, %v98
    %v103 = vsub.f32 %v95, %v99
    %v104 = vld [vmem:[#allocation8] sm:$0xff]
    %v105 = vld [vmem:[#allocation8 + $0x8] sm:$0xff]
    %v106 = vld [vmem:[#allocation8 + $0x10] sm:$0xff]
    %v107 = vld [vmem:[#allocation8 + $0x18] sm:$0xff]
    %v108 = vmul.f32 %v100, %v104
    %v109 = vmul.f32 %v101, %v105
    %v110 = vmul.f32 %v102, %v106
    %v111 = vmul.f32 %v103, %v107
    %v112 = vand.u32 2147483647, %v108
    %v113 = vand.u32 2147483647, %v109
    %v114 = vand.u32 2147483647, %v110
    %v115 = vand.u32 2147483647, %v111
    %v116 = vld [vmem:[#allocation2] sm:$0xff]
    %v117 = vld [vmem:[#allocation2 + $0x8] sm:$0xff]
    %v118 = vld [vmem:[#allocation2 + $0x10] sm:$0xff]
    %v119 = vld [vmem:[#allocation2 + $0x18] sm:$0xff]
    %v120 = vsel %vm91, %v112, 0.0
    %v121 = vsel %vm91, %v113, 0.0
    %v122 = vsel %vm91, %v114, 0.0
    %v123 = vsel %vm91, %v115, 0.0
    %v124 = vadd.f32 %v116, %v120
    %v125 = vadd.f32 %v117, %v121
    %v126 = vadd.f32 %v118, %v122
    %v127 = vadd.f32 %v119, %v123
    %128 = vst [vmem:[#allocation2] sm:$0xff] %v124
    %129 = vst [vmem:[#allocation2 + $0x8] sm:$0xff] %v125
    %130 = vst [vmem:[#allocation2 + $0x10] sm:$0xff] %v126
    %131 = vst [vmem:[#allocation2 + $0x18] sm:$0xff] %v127
    // Predicated region
    $region30: #{tpu_custom_call.1} parent=1 // pred_check
      %p132 = pneg %p77
    $region31: #{tpu_custom_call.1} parent=1 // pred_check_branch
      %134 = sbr.rel (%p132) target = $region33
    $region32: #{tpu_custom_call.1} parent=1 // pred_region
      %v135 = vld [vmem:[#allocation2] sm:$0xff]
      %v136 = vld [vmem:[#allocation2 + $0x8] sm:$0xff]
      %v137 = vld [vmem:[#allocation2 + $0x10] sm:$0xff]
      %v138 = vld [vmem:[#allocation2 + $0x18] sm:$0xff]
      %v139 = vadd.f32 %v135, 0.0
      %v140 = vadd.f32 %v136, 0.0
      %v141 = vadd.f32 %v137, 0.0
      %v142 = vadd.f32 %v138, 0.0
      %143 = vst [vmem:[#allocation9] sm:$0xff] %v139
      %144 = vst [vmem:[#allocation9 + $0x8] sm:$0xff] %v140
      %145 = vst [vmem:[#allocation9 + $0x10] sm:$0xff] %v141
      %146 = vst [vmem:[#allocation9 + $0x18] sm:$0xff] %v142
    $region33: #{tpu_custom_call.1} parent=1 // pred_fallthru
      _
    // Predicated region
    $region34: #{tpu_custom_call.1} parent=1 // pred_check
      _
    $region35: #{tpu_custom_call.1} parent=1 // pred_check_branch
      %148 = sbr.rel (0) target = $region37
    $region36: #{tpu_custom_call.1} parent=1 // pred_region
      %s150 = ssub.s32 512, 512
      %151 = vsyncadd [#allocation5], %s150
      %s153 = sshll.u32 [#allocation9], 4
      %s154 = int_to_ptr.vmem [resolvable:$true] %s153
      %156 = dma.vmem_to_hbm [thread:$0]  %s154, 512, %s3, [#allocation5]
    $region37: #{tpu_custom_call.1} parent=1 // pred_fallthru
      _
    // Predicated region
    $region38: #{tpu_custom_call.1} parent=1 // pred_check
      _
    $region39: #{tpu_custom_call.1} parent=1 // pred_check_branch
      %158 = sbr.rel (0) target = $region41
    $region40: #{tpu_custom_call.1} parent=1 // pred_region
      %159 = dma.done [#allocation5], 512
    $region41: #{tpu_custom_call.1} parent=1 // pred_fallthru
      _
    %160 = vsyncpa [#allocation4], 1
    %161 = vsyncpa [#allocation7], 1
    %162 = vsyncpa [#allocation5], 1

</llo_original>
